<compile_context>
chip_gen: v7x
topology: tpu7x:2x2x1
jax: 0.10.0
libtpu: 0.0.40
codegen_flags: <defaults>
</compile_context>

<pallas_src>
import jax
import jax.numpy as jnp
from jax.experimental import pallas as pl
from jax.experimental.pallas import tpu as pltpu

_LANE = 128
_MIN_PALLAS_ELEMS = 1 << 16  # below this, launch/step overhead dominates


def _sigmoid_kernel(x_ref, o_ref):
    # Elementwise hot path. Compute in f32; one EUP op (tanh) per element plus
    # cheap VPU mul/add: sigmoid(x) = 0.5 * (tanh(x/2) + 1).
    x = x_ref[...].astype(jnp.float32)
    o_ref[...] = (0.5 * (jnp.tanh(0.5 * x) + 1.0)).astype(o_ref.dtype)


def _run_sigmoid_2d(x2d: jax.Array) -> jax.Array:
    """Runs the Pallas sigmoid kernel on a 2D array whose last dim is a multiple of 128."""
    rows, cols = x2d.shape
    dtype = x2d.dtype
    itemsize = jnp.dtype(dtype).itemsize
    # Packed sublane count per dtype width (f32: 8, bf16: 16, int8/fp8: 32).
    sub = {4: 8, 2: 16, 1: 32}.get(itemsize, 8)

    # ~2 MiB blocks: near the HBM-bandwidth plateau on v5e/v6e/v7x, and
    # 2 bufs x (in + out) ~= 8 MiB stays well under v5e's 16 MiB scoped VMEM.
    target_block_bytes = 2 * 1024 * 1024
    rows_per_block = max(sub, ((target_block_bytes // (cols * itemsize)) // sub) * sub)

    if rows <= rows_per_block:
        if rows > sub:
            # Whole array would fit in one block: split into >= 2 blocks so both
            # v7x TensorCores participate (no-op cost on single-TC v5e/v6e).
            tile_rows = max(sub, pl.cdiv(pl.cdiv(rows, 2), sub) * sub)
        else:
            # Row extent <= one sublane group: single block, row dim equals the
            # full array extent (allowed by the (8,128) block rule).
            tile_rows = rows
    else:
        tile_rows = rows_per_block

    grid = (pl.cdiv(rows, tile_rows),)  # ragged last block is masked by Pallas

    return pl.pallas_call(
        _sigmoid_kernel,
        out_shape=jax.ShapeDtypeStruct((rows, cols), dtype),
        grid_spec=pltpu.PrefetchScalarGridSpec(
            num_scalar_prefetch=0,
            grid=grid,
            in_specs=[pl.BlockSpec((tile_rows, cols), lambda i: (i, 0))],
            out_specs=pl.BlockSpec((tile_rows, cols), lambda i: (i, 0)),
        ),
        compiler_params=pltpu.CompilerParams(
            dimension_semantics=("parallel",),
        ),
    )(x2d)


def sigmoid_pallas(x: jax.Array, *, min_pallas_elems: int = _MIN_PALLAS_ELEMS) -> jax.Array:
    """Applies sigmoid elementwise. Works for any shape / float dtype."""
    orig_shape = x.shape
    n = x.size
    if n == 0:
        return x
    if n < min_pallas_elems:
        # Tiny input: fixed pallas_call + per-step overhead dominates; let XLA
        # fuse the elementwise op into its neighbors instead.
        return jax.nn.sigmoid(x).astype(x.dtype)

    # Pick a wide lane-dense column count (multiple of 128) that divides n so
    # the 2D view needs no padding. Rows need NOT be sublane-aligned: the cdiv
    # grid masks the ragged last row-block.
    cols = None
    for cand in (4096, 2048, 1024, 512, 256, 128):
        if n % cand == 0:
            cols = cand
            break

    if cols is not None:
        y2d = _run_sigmoid_2d(x.reshape(n // cols, cols))
        return y2d.reshape(orig_shape)

    # Fallback (n not a multiple of 128): run the kernel on the aligned bulk
    # and finish the tiny (<128-element) tail with plain JAX — no full-array
    # pad/copy round trips through HBM.
    flat = x.reshape(-1)
    m = (n // _LANE) * _LANE
    y_bulk = _run_sigmoid_2d(flat[:m].reshape(m // _LANE, _LANE)).reshape(-1)
    y_tail = jax.nn.sigmoid(flat[m:]).astype(x.dtype)
    return jnp.concatenate([y_bulk, y_tail]).reshape(orig_shape)


if __name__ == "__main__":
    key = jax.random.PRNGKey(0)
    k1, k2, k3 = jax.random.split(key, 3)

    # Spec-shaped NCHW activation: batch=2, channels=4, 16x16 spatial.
    # Force the Pallas path (min_pallas_elems=0) so the kernel is exercised.
    x_small = jax.random.normal(k1, (2, 4, 16, 16), dtype=jnp.float32)
    y_small = jax.block_until_ready(sigmoid_pallas(x_small, min_pallas_elems=0))
    assert y_small.shape == x_small.shape and y_small.dtype == x_small.dtype
    assert bool(jnp.allclose(y_small, jax.nn.sigmoid(x_small), rtol=1e-6, atol=1e-6)), \
        "Sigmoid kernel mismatch (small input)"

    # Larger activation taking the tiled multi-block path (>= 2 grid blocks).
    x_big = jax.random.normal(k2, (8, 16, 64, 64), dtype=jnp.float32)
    y_big = jax.block_until_ready(sigmoid_pallas(x_big))
    assert bool(jnp.allclose(y_big, jax.nn.sigmoid(x_big), rtol=1e-6, atol=1e-6)), \
        "Sigmoid kernel mismatch (large input)"

    # Ragged size exercising the bulk+tail fallback (n not a multiple of 128).
    x_ragged = jax.random.normal(k3, (131072 + 37,), dtype=jnp.float32)
    y_ragged = jax.block_until_ready(sigmoid_pallas(x_ragged))
    assert bool(jnp.allclose(y_ragged, jax.nn.sigmoid(x_ragged), rtol=1e-6, atol=1e-6)), \
        "Sigmoid kernel mismatch (ragged input)"

    print("KERNEL_OK")
</pallas_src>

<mosaic_0001>
module attributes {stable_mosaic.version = 11 : i64} {
  func.func @_sigmoid_kernel(%arg0: i32, %arg1: memref<1x2048xf32, #tpu.memory_space<vmem>>, %arg2: memref<1x2048xf32, #tpu.memory_space<vmem>>) attributes {dimension_semantics = [#tpu.dimension_semantics<parallel>], iteration_bounds = array<i64: 1>, scalar_prefetch = 0 : i64, scratch_operands = 0 : i64, tpu.core_type = #tpu.core_type<tc>, window_params = [{transform_indices = @transform_0, window_bounds = array<i64: 1, 2048>}, {transform_indices = @transform_1, window_bounds = array<i64: 1, 2048>}]} {
    %c0 = arith.constant 0 : index
    %c0_0 = arith.constant 0 : index
    %0 = vector.load %arg1[%c0, %c0_0] : memref<1x2048xf32, #tpu.memory_space<vmem>>, vector<1x2048xf32>
    %cst = arith.constant 5.000000e-01 : f32
    %1 = vector.broadcast %cst : f32 to vector<1x2048xf32>
    %2 = arith.mulf %1, %0 : vector<1x2048xf32>
    %3 = math.tanh %2 : vector<1x2048xf32>
    %cst_1 = arith.constant 1.000000e+00 : f32
    %4 = vector.broadcast %cst_1 : f32 to vector<1x2048xf32>
    %5 = arith.addf %3, %4 : vector<1x2048xf32>
    %cst_2 = arith.constant 5.000000e-01 : f32
    %6 = vector.broadcast %cst_2 : f32 to vector<1x2048xf32>
    %7 = arith.mulf %6, %5 : vector<1x2048xf32>
    %c0_3 = arith.constant 0 : index
    %c0_4 = arith.constant 0 : index
    %8 = vector.load %arg2[%c0_3, %c0_4] : memref<1x2048xf32, #tpu.memory_space<vmem>>, vector<1x2048xf32>
    tpu.vector_store %arg2[%c0_3, %c0_4], %7 {strides = array<i32>} : memref<1x2048xf32, #tpu.memory_space<vmem>>, vector<1x2048xf32>,
    return
  }
  func.func @transform_0(%arg0: i32) -> (i32, i32) {
    %c0_i32 = arith.constant 0 : i32
    %c0_i32_0 = arith.constant 0 : i32
    return %arg0, %c0_i32 : i32, i32
  }
  func.func @transform_1(%arg0: i32) -> (i32, i32) {
    %c0_i32 = arith.constant 0 : i32
    %c0_i32_0 = arith.constant 0 : i32
    return %arg0, %c0_i32 : i32, i32
  }
}

</mosaic_0001>

<llo_original>
// kernel: tpu_custom_call.1
$region0: #{tpu_custom_call.1}
  #allocation0 [shape = 'u32[]', space=smem, size = 0x4, offset = 0x4, fixed_abs, tag = 'smem constant byte address 0x4 - core index']
  #allocation1 [shape = 'u32[144,128]{1,0:T(1,128)}', space=vmem, size = 0x12000, scoped, tag = 'internal scratch']
  %s0 = inlined_call_operand.hbm [shape: f32[1,2048], index: 0, kind: input, shape index: {}]
  %s1 = inlined_call_operand.hbm [shape: f32[1,2048], index: 1, kind: output, shape index: {}]
  %s2 = sld [smem:[#allocation0]]
  $region18: #{tpu_custom_call.1} parent=0
    _
  %s4 = ssub.s32 1, %s2
  %s5 = scalar_select 0, %s4, %s2
  $region1: #{tpu_custom_call.1} parent=0
    #allocation2 [shape = 'u8[8192]{0}', space=vmem, size = 0x2000, scoped, tag = 'input window, operand 0, single buffered']
    #allocation3 [shape = 's32[1]{0}', space=sflag, size = 0x4, scoped, tag = 'scoped memory for tpu_custom_call.1']
    #allocation4 [shape = 's32[1]{0}', space=sflag, size = 0x4, scoped, tag = 'scoped memory for tpu_custom_call.1']
    #allocation5 [shape = 'u8[8192]{0}', space=vmem, size = 0x2000, scoped, tag = 'output window, operand 0, single buffered']
    %6 = vsyncpa [#allocation3], 0
    %7 = vsyncpa [#allocation4], 0
    // Predicated region
    $region2: #{tpu_custom_call.1} parent=1 // pred_check
      _
    $region3: #{tpu_custom_call.1} parent=1 // pred_check_branch
      %9 = sbr.rel (0) target = $region5
    $region4: #{tpu_custom_call.1} parent=1 // pred_region
      %s11 = ssub.s32 256, 256
      %12 = vsyncadd [#allocation3], %s11
      %s14 = sshll.u32 [#allocation2], 4
      %s15 = int_to_ptr.vmem [resolvable:$true] %s14
      %17 = dma.hbm_to_vmem [thread:$0]  %s0, 256, %s15, [#allocation3]
    $region5: #{tpu_custom_call.1} parent=1 // pred_fallthru
      _
    // Predicated region
    $region6: #{tpu_custom_call.1} parent=1 // pred_check
      _
    $region7: #{tpu_custom_call.1} parent=1 // pred_check_branch
      %19 = sbr.rel (0) target = $region9
    $region8: #{tpu_custom_call.1} parent=1 // pred_region
      %20 = dma.done [#allocation3], 256
    $region9: #{tpu_custom_call.1} parent=1 // pred_fallthru
      _
    %v21 = vld [vmem:[#allocation2] sm:$0xff]
    %v22 = vld [vmem:[#allocation2 + $0x8] sm:$0xff]
    %v23 = vmul.f32 %v21, 0.5
    %v24 = vmul.f32 %v22, 0.5
    %v25 = vtanh.pop %v23
    %v26 = vtanh.pop %v24
    %v27 = vadd.f32 %v25, 1.0
    %v28 = vadd.f32 %v26, 1.0
    %v29 = vmul.f32 %v27, 0.5
    %v30 = vmul.f32 %v28, 0.5
    %31 = vst [vmem:[#allocation5] sm:$0xff] %v29
    %32 = vst [vmem:[#allocation5 + $0x8] sm:$0xff] %v30
    // Predicated region
    $region10: #{tpu_custom_call.1} parent=1 // pred_check
      _
    $region11: #{tpu_custom_call.1} parent=1 // pred_check_branch
      %34 = sbr.rel (0) target = $region13
    $region12: #{tpu_custom_call.1} parent=1 // pred_region
      %s36 = ssub.s32 256, 256
      %37 = vsyncadd [#allocation4], %s36
      %s39 = sshll.u32 [#allocation5], 4
      %s40 = int_to_ptr.vmem [resolvable:$true] %s39
      %42 = dma.vmem_to_hbm [thread:$0]  %s40, 256, %s1, [#allocation4]
    $region13: #{tpu_custom_call.1} parent=1 // pred_fallthru
      _
    // Predicated region
    $region14: #{tpu_custom_call.1} parent=1 // pred_check
      _
    $region15: #{tpu_custom_call.1} parent=1 // pred_check_branch
      %44 = sbr.rel (0) target = $region17
    $region16: #{tpu_custom_call.1} parent=1 // pred_region
      %45 = dma.done [#allocation4], 256
    $region17: #{tpu_custom_call.1} parent=1 // pred_fallthru
      _
    %46 = vsyncpa [#allocation3], 1
    %47 = vsyncpa [#allocation4], 1

</llo_original>
